<compile_context>
chip_gen: v6e
topology: v6e:2x2x1
jax: 0.10.0
libtpu: 0.0.40
codegen_flags: <defaults>
</compile_context>

<pallas_src>
import functools

import jax
import jax.numpy as jnp
from jax.experimental import pallas as pl
from jax.experimental.pallas import tpu as pltpu

# hyperparameters from MultiSimilarity_v2.__init__
THRESH = 0.5       # base (lambda) of MultiSimilarityLoss
EPSILON = 0.1      # MultiSimilarityMiner epsilon
SCALE_POS = 2.0    # alpha
SCALE_NEG = 50.0   # beta

# Cast the L2-normalized embeddings to bf16 before the MXU matmul (all threshold / exp math
# stays on the f32 result).  Off by default so the kernel matches the f32 torch/JAX reference
# numerics exactly; flip on for large D/N where the ~1e-3 similarity rounding is acceptable.
USE_BF16_MXU = False


def _round_up(x, m):
    return ((x + m - 1) // m) * m


def _ms_loss_kernel(emb_ref, lab_r_ref, lab_c_ref, out_ref,
                    q_ref, maxneg_ref, minpos_ref, possum_ref, negsum_ref,
                    *, n_valid):
    """One (row_tile, pass, col_tile) grid step.

    emb_ref   : (N_pad, D) f32, fully VMEM-resident (constant block index).
    lab_r_ref : (tm, 1)  int32 labels of the current row tile.
    lab_c_ref : (1, tn)  int32 labels of the current column tile.
    out_ref   : (tm, 1)  f32 per-anchor loss (written on the last column step of pass 1).
    scratch   : q (tm, D) normalized row tile; (tm,1) max_neg / min_pos / pos_sum / neg_sum.
    """
    tm = out_ref.shape[0]
    tn = lab_c_ref.shape[1]
    n_pad = emb_ref.shape[0]

    r = pl.program_id(0)      # row tile
    p = pl.program_id(1)      # pass: 0 = miner stats, 1 = log-sum-exp
    c = pl.program_id(2)      # column tile
    nct = pl.num_programs(2)

    # --- first step of a row tile: normalize the row block, reset accumulators ---------------
    @pl.when(jnp.logical_and(p == 0, c == 0))
    def _init():
        row_start = pl.multiple_of(r * tm, 8)
        q = emb_ref[pl.ds(row_start, tm), :]
        q = q * jax.lax.rsqrt(jnp.maximum(jnp.sum(q * q, axis=-1, keepdims=True), 1e-24))
        q_ref[...] = q.astype(q_ref.dtype)
        maxneg_ref[...] = jnp.full_like(maxneg_ref, -jnp.inf)
        minpos_ref[...] = jnp.full_like(minpos_ref, jnp.inf)
        possum_ref[...] = jnp.zeros_like(possum_ref)
        negsum_ref[...] = jnp.zeros_like(negsum_ref)

    # --- current column tile: normalize and compute the (tm, tn) similarity tile (MXU) -------
    col_start = pl.multiple_of(c * tn, 8)
    k = emb_ref[pl.ds(col_start, tn), :]
    k = k * jax.lax.rsqrt(jnp.maximum(jnp.sum(k * k, axis=-1, keepdims=True), 1e-24))
    k = k.astype(q_ref.dtype)

    s = jax.lax.dot_general(q_ref[...], k, (((1,), (1,)), ((), ())),
                            preferred_element_type=jnp.float32)        # (tm, tn) f32

    # --- pair labels for this tile (tile-local iotas only, no N x N intermediates) ------------
    lab_r = lab_r_ref[...]                                              # (tm, 1)
    lab_c = lab_c_ref[...]                                              # (1, tn)
    same = lab_r == lab_c
    row_ids = r * tm + jax.lax.broadcasted_iota(jnp.int32, (tm, 1), 0)
    col_ids = c * tn + jax.lax.broadcasted_iota(jnp.int32, (1, tn), 1)
    pos_label = jnp.logical_and(same, row_ids != col_ids)
    neg_label = jnp.logical_not(same)
    if n_valid != n_pad:   # static: only when padding was added; padded rows/cols form no pairs
        valid = jnp.logical_and(row_ids < n_valid, col_ids < n_valid)
        pos_label = jnp.logical_and(pos_label, valid)
        neg_label = jnp.logical_and(neg_label, valid)

    # --- pass 0: MultiSimilarityMiner statistics ----------------------------------------------
    @pl.when(p == 0)
    def _pass_miner():
        maxneg_ref[...] = jnp.maximum(
            maxneg_ref[...],
            jnp.max(jnp.where(neg_label, s, -jnp.inf), axis=1, keepdims=True))
        minpos_ref[...] = jnp.minimum(
            minpos_ref[...],
            jnp.min(jnp.where(pos_label, s, jnp.inf), axis=1, keepdims=True))

    # --- pass 1: masked log-sum-exp accumulation -----------------------------------------------
    @pl.when(p == 1)
    def _pass_lse():
        pos_mask = jnp.logical_and(pos_label, (s - EPSILON) < maxneg_ref[...])
        neg_mask = jnp.logical_and(neg_label, (s + EPSILON) > minpos_ref[...])
        possum_ref[...] += jnp.sum(
            jnp.where(pos_mask, jnp.exp(SCALE_POS * (THRESH - s)), 0.0),
            axis=1, keepdims=True)
        negsum_ref[...] += jnp.sum(
            jnp.where(neg_mask, jnp.exp(SCALE_NEG * (s - THRESH)), 0.0),
            axis=1, keepdims=True)

    # --- finalize: per-anchor loss (exp > 0 wherever the mask is true, so sum>0 == any(mask)) --
    @pl.when(jnp.logical_and(p == 1, c == nct - 1))
    def _finalize():
        ps = possum_ref[...]
        ns = negsum_ref[...]
        pos_loss = jnp.where(ps > 0.0, jnp.log1p(ps) * (1.0 / SCALE_POS), 0.0)
        neg_loss = jnp.where(ns > 0.0, jnp.log1p(ns) * (1.0 / SCALE_NEG), 0.0)
        out_ref[...] = pos_loss + neg_loss


def multi_similarity_v2_forward(embeddings, labels):
    """embeddings: (B, U, D) float32, labels: (B,) int.  Returns (loss, 0) like the torch module."""
    assert embeddings.shape[0] == labels.shape[0], "feats.size(0) != labels.size(0)"
    b, u, d = embeddings.shape
    n = b * u

    labels_rep = jnp.repeat(labels.astype(jnp.int32), u)                 # repeat_interleave
    emb2d = embeddings.reshape(n, d).astype(jnp.float32)                  # (N, D)

    # tile sizes: single tile for small N, 256x256 tiles otherwise (fits v5e/v6e/v7x VMEM budgets)
    if n <= 256:
        tm = tn = _round_up(n, 8)
    else:
        tm = tn = 256
    n_pad = _round_up(n, max(tm, tn))

    if n_pad != n:
        emb2d = jnp.pad(emb2d, ((0, n_pad - n), (0, 0)))
        labels_rep = jnp.pad(labels_rep, (0, n_pad - n), constant_values=-1)
    lab_row = labels_rep.reshape(n_pad, 1)
    lab_col = labels_rep.reshape(1, n_pad)

    nrt = n_pad // tm
    nct = n_pad // tn

    kernel = functools.partial(_ms_loss_kernel, n_valid=n)
    mm_dtype = jnp.bfloat16 if USE_BF16_MXU else jnp.float32

    per_anchor = pl.pallas_call(
        kernel,
        out_shape=jax.ShapeDtypeStruct((n_pad, 1), jnp.float32),
        grid_spec=pltpu.PrefetchScalarGridSpec(
            num_scalar_prefetch=0,
            grid=(nrt, 2, nct),
            in_specs=[
                # full (N_pad, D) embeddings, VMEM-resident (block index never changes)
                pl.BlockSpec((n_pad, d), lambda r, p, c: (0, 0)),
                # labels for the current row tile, as a (tm, 1) column
                pl.BlockSpec((tm, 1), lambda r, p, c: (r, 0)),
                # labels for the current column tile, as a (1, tn) row
                pl.BlockSpec((1, tn), lambda r, p, c: (0, c)),
            ],
            out_specs=pl.BlockSpec((tm, 1), lambda r, p, c: (r, 0)),
            scratch_shapes=[
                pltpu.VMEM((tm, d), mm_dtype),      # normalized row tile (reused across passes)
                pltpu.VMEM((tm, 1), jnp.float32),   # max_neg
                pltpu.VMEM((tm, 1), jnp.float32),   # min_pos
                pltpu.VMEM((tm, 1), jnp.float32),   # pos_sum
                pltpu.VMEM((tm, 1), jnp.float32),   # neg_sum
            ],
        ),
        compiler_params=pltpu.CompilerParams(
            dimension_semantics=("parallel", "arbitrary", "arbitrary"),
            vmem_limit_bytes=64 * 1024 * 1024,
        ),
    )(emb2d, lab_row, lab_col)

    loss = jnp.sum(per_anchor) / jnp.float32(n)     # MeanReducer over all N anchors
    return loss, 0


def _ref_forward(embeddings, labels):
    """Pure-JAX reference of miner + MS loss (for correctness check)."""
    b, u, d = embeddings.shape
    lab = jnp.repeat(labels.astype(jnp.int32), u)
    x = embeddings.reshape(-1, d).astype(jnp.float32)
    e = x * jax.lax.rsqrt(jnp.maximum(jnp.sum(x * x, axis=1, keepdims=True), 1e-24))
    e_mm = e.astype(jnp.bfloat16) if USE_BF16_MXU else e
    s = jax.lax.dot_general(e_mm, e_mm, (((1,), (1,)), ((), ())),
                            preferred_element_type=jnp.float32,
                            precision=jax.lax.Precision.HIGHEST)
    n = x.shape[0]
    same = lab[:, None] == lab[None, :]
    pos_label = same & (~jnp.eye(n, dtype=bool))
    neg_label = ~same
    max_neg = jnp.max(jnp.where(neg_label, s, -jnp.inf), axis=1, keepdims=True)
    min_pos = jnp.min(jnp.where(pos_label, s, jnp.inf), axis=1, keepdims=True)
    pos_mask = pos_label & ((s - EPSILON) < max_neg)
    neg_mask = neg_label & ((s + EPSILON) > min_pos)
    pos_sum = jnp.sum(jnp.where(pos_mask, jnp.exp(SCALE_POS * (THRESH - s)), 0.0), axis=1)
    neg_sum = jnp.sum(jnp.where(neg_mask, jnp.exp(SCALE_NEG * (s - THRESH)), 0.0), axis=1)
    pos_loss = jnp.where(pos_sum > 0.0, jnp.log1p(pos_sum) / SCALE_POS, 0.0)
    neg_loss = jnp.where(neg_sum > 0.0, jnp.log1p(neg_sum) / SCALE_NEG, 0.0)
    return jnp.mean(pos_loss + neg_loss)


if __name__ == "__main__":
    key = jax.random.PRNGKey(0)
    k1, k2 = jax.random.split(key)

    # Test 1: tiny single-tile case (4 speakers x 4 utterances, dim 32) -> N = 16.
    B, U, D = 4, 4, 32
    embeddings = jax.random.normal(k1, (B, U, D), dtype=jnp.float32)
    labels = jnp.arange(B, dtype=jnp.int32)
    loss, zero = multi_similarity_v2_forward(embeddings, labels)
    loss = jax.block_until_ready(loss)
    ref = jax.block_until_ready(_ref_forward(embeddings, labels))
    assert jnp.isfinite(loss)
    assert jnp.allclose(loss, ref, rtol=1e-3, atol=1e-6), (float(loss), float(ref))

    # Test 2: exercises the multi-tile + padding path (N = 24*12 = 288 -> padded to 512,
    # grid = (2 row tiles, 2 passes, 2 column tiles)).
    B2, U2, D2 = 24, 12, 64
    embeddings2 = jax.random.normal(k2, (B2, U2, D2), dtype=jnp.float32)
    labels2 = jnp.arange(B2, dtype=jnp.int32)
    loss2, _ = multi_similarity_v2_forward(embeddings2, labels2)
    loss2 = jax.block_until_ready(loss2)
    ref2 = jax.block_until_ready(_ref_forward(embeddings2, labels2))
    assert jnp.isfinite(loss2)
    assert jnp.allclose(loss2, ref2, rtol=1e-3, atol=1e-6), (float(loss2), float(ref2))

    print("KERNEL_OK")
</pallas_src>

<mosaic_0001>
module attributes {stable_mosaic.version = 11 : i64} {
  func.func @_ms_loss_kernel(%arg0: i32, %arg1: i32, %arg2: i32, %arg3: memref<16x32xf32, #tpu.memory_space<vmem>>, %arg4: memref<16x1xi32, #tpu.memory_space<vmem>>, %arg5: memref<1x16xi32, #tpu.memory_space<vmem>>, %arg6: memref<16x1xf32, #tpu.memory_space<vmem>>, %arg7: memref<16x32xf32, #tpu.memory_space<vmem>>, %arg8: memref<16x1xf32, #tpu.memory_space<vmem>>, %arg9: memref<16x1xf32, #tpu.memory_space<vmem>>, %arg10: memref<16x1xf32, #tpu.memory_space<vmem>>, %arg11: memref<16x1xf32, #tpu.memory_space<vmem>>) attributes {dimension_semantics = [#tpu.dimension_semantics<parallel>, #tpu.dimension_semantics<arbitrary>, #tpu.dimension_semantics<arbitrary>], iteration_bounds = array<i64: 1, 2, 1>, scalar_prefetch = 0 : i64, scratch_operands = 5 : i64, tpu.core_type = #tpu.core_type<tc>, window_params = [{pipeline_mode = #tpu.pipeline_mode<synchronous>, transform_indices = @transform_0, window_bounds = array<i64: 16, 32>}, {transform_indices = @transform_1, window_bounds = array<i64: 16, 1>}, {transform_indices = @transform_2, window_bounds = array<i64: 1, 16>}, {transform_indices = @transform_3, window_bounds = array<i64: 16, 1>}]} {
    %c0_i32 = arith.constant 0 : i32
    %0 = arith.cmpi eq, %arg1, %c0_i32 : i32
    %c0_i32_0 = arith.constant 0 : i32
    %1 = arith.cmpi eq, %arg2, %c0_i32_0 : i32
    %2 = arith.andi %0, %1 : i1
    %3 = arith.extui %2 : i1 to i32
    %c0_i32_1 = arith.constant 0 : i32
    %4 = arith.cmpi ne, %3, %c0_i32_1 : i32
    scf.if %4 {
      %c16_i32_19 = arith.constant 16 : i32
      %48 = arith.muli %arg0, %c16_i32_19 : i32
      %49 = tpu.assume_multiple %48, 8 : i32
      %50 = arith.index_cast %49 : i32 to index
      %c0_20 = arith.constant 0 : index
      %51 = vector.load %arg3[%50, %c0_20] : memref<16x32xf32, #tpu.memory_space<vmem>>, vector<16x32xf32>
      %52 = arith.mulf %51, %51 : vector<16x32xf32>
      %cst_21 = arith.constant dense<0.000000e+00> : vector<16xf32>
      %53 = vector.multi_reduction <add>, %52, %cst_21 [1] : vector<16x32xf32> to vector<16xf32>
      %54 = vector.shape_cast %53 : vector<16xf32> to vector<16x1xf32>
      %cst_22 = arith.constant 1.000000e-24 : f32
      %55 = vector.broadcast %cst_22 : f32 to vector<16x1xf32>
      %56 = arith.maximumf %54, %55 : vector<16x1xf32>
      %57 = math.rsqrt %56 : vector<16x1xf32>
      %58 = vector.broadcast %57 : vector<16x1xf32> to vector<16x32xf32>
      %59 = arith.mulf %51, %58 : vector<16x32xf32>
      %c0_23 = arith.constant 0 : index
      %c0_24 = arith.constant 0 : index
      %60 = vector.load %arg7[%c0_23, %c0_24] : memref<16x32xf32, #tpu.memory_space<vmem>>, vector<16x32xf32>
      tpu.vector_store %arg7[%c0_23, %c0_24], %59 {strides = array<i32>} : memref<16x32xf32, #tpu.memory_space<vmem>>, vector<16x32xf32>,
      %cst_25 = arith.constant 0xFF800000 : f32
      %61 = vector.broadcast %cst_25 : f32 to vector<16x1xf32>
      %c0_26 = arith.constant 0 : index
      %c0_27 = arith.constant 0 : index
      %62 = vector.load %arg8[%c0_26, %c0_27] : memref<16x1xf32, #tpu.memory_space<vmem>>, vector<16x1xf32>
      tpu.vector_store %arg8[%c0_26, %c0_27], %61 {strides = array<i32>} : memref<16x1xf32, #tpu.memory_space<vmem>>, vector<16x1xf32>,
      %cst_28 = arith.constant 0x7F800000 : f32
      %63 = vector.broadcast %cst_28 : f32 to vector<16x1xf32>
      %c0_29 = arith.constant 0 : index
      %c0_30 = arith.constant 0 : index
      %64 = vector.load %arg9[%c0_29, %c0_30] : memref<16x1xf32, #tpu.memory_space<vmem>>, vector<16x1xf32>
      tpu.vector_store %arg9[%c0_29, %c0_30], %63 {strides = array<i32>} : memref<16x1xf32, #tpu.memory_space<vmem>>, vector<16x1xf32>,
      %cst_31 = arith.constant 0.000000e+00 : f32
      %65 = vector.broadcast %cst_31 : f32 to vector<16x1xf32>
      %c0_32 = arith.constant 0 : index
      %c0_33 = arith.constant 0 : index
      %66 = vector.load %arg10[%c0_32, %c0_33] : memref<16x1xf32, #tpu.memory_space<vmem>>, vector<16x1xf32>
      tpu.vector_store %arg10[%c0_32, %c0_33], %65 {strides = array<i32>} : memref<16x1xf32, #tpu.memory_space<vmem>>, vector<16x1xf32>,
      %cst_34 = arith.constant 0.000000e+00 : f32
      %67 = vector.broadcast %cst_34 : f32 to vector<16x1xf32>
      %c0_35 = arith.constant 0 : index
      %c0_36 = arith.constant 0 : index
      %68 = vector.load %arg11[%c0_35, %c0_36] : memref<16x1xf32, #tpu.memory_space<vmem>>, vector<16x1xf32>
      tpu.vector_store %arg11[%c0_35, %c0_36], %67 {strides = array<i32>} : memref<16x1xf32, #tpu.memory_space<vmem>>, vector<16x1xf32>,
    } else {
    }
    %c16_i32 = arith.constant 16 : i32
    %5 = arith.muli %arg2, %c16_i32 : i32
    %6 = tpu.assume_multiple %5, 8 : i32
    %7 = arith.index_cast %6 : i32 to index
    %c0 = arith.constant 0 : index
    %8 = vector.load %arg3[%7, %c0] : memref<16x32xf32, #tpu.memory_space<vmem>>, vector<16x32xf32>
    %9 = arith.mulf %8, %8 : vector<16x32xf32>
    %cst = arith.constant dense<0.000000e+00> : vector<16xf32>
    %10 = vector.multi_reduction <add>, %9, %cst [1] : vector<16x32xf32> to vector<16xf32>
    %11 = vector.shape_cast %10 : vector<16xf32> to vector<16x1xf32>
    %cst_2 = arith.constant 1.000000e-24 : f32
    %12 = vector.broadcast %cst_2 : f32 to vector<16x1xf32>
    %13 = arith.maximumf %11, %12 : vector<16x1xf32>
    %14 = math.rsqrt %13 : vector<16x1xf32>
    %15 = vector.broadcast %14 : vector<16x1xf32> to vector<16x32xf32>
    %16 = arith.mulf %8, %15 : vector<16x32xf32>
    %c0_3 = arith.constant 0 : index
    %c0_4 = arith.constant 0 : index
    %17 = vector.load %arg7[%c0_3, %c0_4] : memref<16x32xf32, #tpu.memory_space<vmem>>, vector<16x32xf32>
    %cst_5 = arith.constant dense<0.000000e+00> : vector<16x16xf32>
    %18 = tpu.matmul %17, %16, %cst_5 {dimension_numbers = #tpu.dot_dimension_numbers<[1], [1], [0], [0], [0, 0, 1, 0], [], []>} : vector<16x32xf32>, vector<16x32xf32>, vector<16x16xf32> -> vector<16x16xf32>
    %c0_6 = arith.constant 0 : index
    %c0_7 = arith.constant 0 : index
    %19 = vector.load %arg4[%c0_6, %c0_7] : memref<16x1xi32, #tpu.memory_space<vmem>>, vector<16x1xi32>
    %c0_8 = arith.constant 0 : index
    %c0_9 = arith.constant 0 : index
    %20 = vector.load %arg5[%c0_8, %c0_9] : memref<1x16xi32, #tpu.memory_space<vmem>>, vector<1x16xi32>
    %21 = vector.broadcast %19 : vector<16x1xi32> to vector<16x16xi32>
    %22 = vector.broadcast %20 : vector<1x16xi32> to vector<16x16xi32>
    %23 = arith.cmpi eq, %21, %22 : vector<16x16xi32>
    %c16_i32_10 = arith.constant 16 : i32
    %24 = arith.muli %arg0, %c16_i32_10 : i32
    %25 = tpu.iota {dimensions = array<i32: 0>} : vector<16x1xi32>
    %26 = vector.broadcast %24 : i32 to vector<16x1xi32>
    %27 = arith.addi %26, %25 : vector<16x1xi32>
    %c16_i32_11 = arith.constant 16 : i32
    %28 = arith.muli %arg2, %c16_i32_11 : i32
    %29 = tpu.iota {dimensions = array<i32: 1>} : vector<1x16xi32>
    %30 = vector.broadcast %28 : i32 to vector<1x16xi32>
    %31 = arith.addi %30, %29 : vector<1x16xi32>
    %32 = vector.broadcast %27 : vector<16x1xi32> to vector<16x16xi32>
    %33 = vector.broadcast %31 : vector<1x16xi32> to vector<16x16xi32>
    %34 = arith.cmpi ne, %32, %33 : vector<16x16xi32>
    %35 = arith.andi %23, %34 : vector<16x16xi1>
    %cst_12 = arith.constant dense<true> : vector<16x16xi1>
    %36 = arith.xori %23, %cst_12 : vector<16x16xi1>
    %c0_i32_13 = arith.constant 0 : i32
    %37 = arith.cmpi eq, %arg1, %c0_i32_13 : i32
    %38 = arith.extui %37 : i1 to i32
    %c0_i32_14 = arith.constant 0 : i32
    %39 = arith.cmpi ne, %38, %c0_i32_14 : i32
    scf.if %39 {
      %c0_19 = arith.constant 0 : index
      %c0_20 = arith.constant 0 : index
      %48 = vector.load %arg8[%c0_19, %c0_20] : memref<16x1xf32, #tpu.memory_space<vmem>>, vector<16x1xf32>
      %cst_21 = arith.constant 0xFF800000 : f32
      %49 = vector.broadcast %cst_21 : f32 to vector<16x16xf32>
      %50 = arith.select %36, %18, %49 : vector<16x16xi1>, vector<16x16xf32>
      %cst_22 = arith.constant dense<0xFF800000> : vector<16xf32>
      %51 = vector.multi_reduction <maximumf>, %50, %cst_22 [1] : vector<16x16xf32> to vector<16xf32>
      %52 = vector.shape_cast %51 : vector<16xf32> to vector<16x1xf32>
      %53 = arith.maximumf %48, %52 : vector<16x1xf32>
      %c0_23 = arith.constant 0 : index
      %c0_24 = arith.constant 0 : index
      %54 = vector.load %arg8[%c0_23, %c0_24] : memref<16x1xf32, #tpu.memory_space<vmem>>, vector<16x1xf32>
      tpu.vector_store %arg8[%c0_23, %c0_24], %53 {strides = array<i32>} : memref<16x1xf32, #tpu.memory_space<vmem>>, vector<16x1xf32>,
      %c0_25 = arith.constant 0 : index
      %c0_26 = arith.constant 0 : index
      %55 = vector.load %arg9[%c0_25, %c0_26] : memref<16x1xf32, #tpu.memory_space<vmem>>, vector<16x1xf32>
      %cst_27 = arith.constant 0x7F800000 : f32
      %56 = vector.broadcast %cst_27 : f32 to vector<16x16xf32>
      %57 = arith.select %35, %18, %56 : vector<16x16xi1>, vector<16x16xf32>
      %cst_28 = arith.constant dense<0x7F800000> : vector<16xf32>
      %58 = vector.multi_reduction <minimumf>, %57, %cst_28 [1] : vector<16x16xf32> to vector<16xf32>
      %59 = vector.shape_cast %58 : vector<16xf32> to vector<16x1xf32>
      %60 = arith.minimumf %55, %59 : vector<16x1xf32>
      %c0_29 = arith.constant 0 : index
      %c0_30 = arith.constant 0 : index
      %61 = vector.load %arg9[%c0_29, %c0_30] : memref<16x1xf32, #tpu.memory_space<vmem>>, vector<16x1xf32>
      tpu.vector_store %arg9[%c0_29, %c0_30], %60 {strides = array<i32>} : memref<16x1xf32, #tpu.memory_space<vmem>>, vector<16x1xf32>,
    } else {
    }
    %c1_i32 = arith.constant 1 : i32
    %40 = arith.cmpi eq, %arg1, %c1_i32 : i32
    %41 = arith.extui %40 : i1 to i32
    %c0_i32_15 = arith.constant 0 : i32
    %42 = arith.cmpi ne, %41, %c0_i32_15 : i32
    scf.if %42 {
      %cst_19 = arith.constant 1.000000e-01 : f32
      %48 = vector.broadcast %cst_19 : f32 to vector<16x16xf32>
      %49 = arith.subf %18, %48 : vector<16x16xf32>
      %c0_20 = arith.constant 0 : index
      %c0_21 = arith.constant 0 : index
      %50 = vector.load %arg8[%c0_20, %c0_21] : memref<16x1xf32, #tpu.memory_space<vmem>>, vector<16x1xf32>
      %51 = vector.broadcast %50 : vector<16x1xf32> to vector<16x16xf32>
      %52 = arith.cmpf olt, %49, %51 : vector<16x16xf32>
      %53 = arith.andi %35, %52 : vector<16x16xi1>
      %cst_22 = arith.constant 1.000000e-01 : f32
      %54 = vector.broadcast %cst_22 : f32 to vector<16x16xf32>
      %55 = arith.addf %18, %54 : vector<16x16xf32>
      %c0_23 = arith.constant 0 : index
      %c0_24 = arith.constant 0 : index
      %56 = vector.load %arg9[%c0_23, %c0_24] : memref<16x1xf32, #tpu.memory_space<vmem>>, vector<16x1xf32>
      %57 = vector.broadcast %56 : vector<16x1xf32> to vector<16x16xf32>
      %58 = arith.cmpf ogt, %55, %57 : vector<16x16xf32>
      %59 = arith.andi %36, %58 : vector<16x16xi1>
      %c0_25 = arith.constant 0 : index
      %c0_26 = arith.constant 0 : index
      %60 = vector.load %arg10[%c0_25, %c0_26] : memref<16x1xf32, #tpu.memory_space<vmem>>, vector<16x1xf32>
      %cst_27 = arith.constant 5.000000e-01 : f32
      %61 = vector.broadcast %cst_27 : f32 to vector<16x16xf32>
      %62 = arith.subf %61, %18 : vector<16x16xf32>
      %cst_28 = arith.constant 2.000000e+00 : f32
      %63 = vector.broadcast %cst_28 : f32 to vector<16x16xf32>
      %64 = arith.mulf %63, %62 : vector<16x16xf32>
      %65 = math.exp %64 : vector<16x16xf32>
      %cst_29 = arith.constant 0.000000e+00 : f32
      %66 = vector.broadcast %cst_29 : f32 to vector<16x16xf32>
      %67 = arith.select %53, %65, %66 : vector<16x16xi1>, vector<16x16xf32>
      %cst_30 = arith.constant dense<0.000000e+00> : vector<16xf32>
      %68 = vector.multi_reduction <add>, %67, %cst_30 [1] : vector<16x16xf32> to vector<16xf32>
      %69 = vector.shape_cast %68 : vector<16xf32> to vector<16x1xf32>
      %70 = arith.addf %60, %69 : vector<16x1xf32>
      %c0_31 = arith.constant 0 : index
      %c0_32 = arith.constant 0 : index
      %71 = vector.load %arg10[%c0_31, %c0_32] : memref<16x1xf32, #tpu.memory_space<vmem>>, vector<16x1xf32>
      tpu.vector_store %arg10[%c0_31, %c0_32], %70 {strides = array<i32>} : memref<16x1xf32, #tpu.memory_space<vmem>>, vector<16x1xf32>,
      %c0_33 = arith.constant 0 : index
      %c0_34 = arith.constant 0 : index
      %72 = vector.load %arg11[%c0_33, %c0_34] : memref<16x1xf32, #tpu.memory_space<vmem>>, vector<16x1xf32>
      %cst_35 = arith.constant 5.000000e-01 : f32
      %73 = vector.broadcast %cst_35 : f32 to vector<16x16xf32>
      %74 = arith.subf %18, %73 : vector<16x16xf32>
      %cst_36 = arith.constant 5.000000e+01 : f32
      %75 = vector.broadcast %cst_36 : f32 to vector<16x16xf32>
      %76 = arith.mulf %75, %74 : vector<16x16xf32>
      %77 = math.exp %76 : vector<16x16xf32>
      %cst_37 = arith.constant 0.000000e+00 : f32
      %78 = vector.broadcast %cst_37 : f32 to vector<16x16xf32>
      %79 = arith.select %59, %77, %78 : vector<16x16xi1>, vector<16x16xf32>
      %cst_38 = arith.constant dense<0.000000e+00> : vector<16xf32>
      %80 = vector.multi_reduction <add>, %79, %cst_38 [1] : vector<16x16xf32> to vector<16xf32>
      %81 = vector.shape_cast %80 : vector<16xf32> to vector<16x1xf32>
      %82 = arith.addf %72, %81 : vector<16x1xf32>
      %c0_39 = arith.constant 0 : index
      %c0_40 = arith.constant 0 : index
      %83 = vector.load %arg11[%c0_39, %c0_40] : memref<16x1xf32, #tpu.memory_space<vmem>>, vector<16x1xf32>
      tpu.vector_store %arg11[%c0_39, %c0_40], %82 {strides = array<i32>} : memref<16x1xf32, #tpu.memory_space<vmem>>, vector<16x1xf32>,
    } else {
    }
    %c1_i32_16 = arith.constant 1 : i32
    %43 = arith.cmpi eq, %arg1, %c1_i32_16 : i32
    %c0_i32_17 = arith.constant 0 : i32
    %44 = arith.cmpi eq, %arg2, %c0_i32_17 : i32
    %45 = arith.andi %43, %44 : i1
    %46 = arith.extui %45 : i1 to i32
    %c0_i32_18 = arith.constant 0 : i32
    %47 = arith.cmpi ne, %46, %c0_i32_18 : i32
    scf.if %47 {
      %c0_19 = arith.constant 0 : index
      %c0_20 = arith.constant 0 : index
      %48 = vector.load %arg10[%c0_19, %c0_20] : memref<16x1xf32, #tpu.memory_space<vmem>>, vector<16x1xf32>
      %c0_21 = arith.constant 0 : index
      %c0_22 = arith.constant 0 : index
      %49 = vector.load %arg11[%c0_21, %c0_22] : memref<16x1xf32, #tpu.memory_space<vmem>>, vector<16x1xf32>
      %cst_23 = arith.constant 0.000000e+00 : f32
      %50 = vector.broadcast %cst_23 : f32 to vector<16x1xf32>
      %51 = arith.cmpf ogt, %48, %50 : vector<16x1xf32>
      %52 = math.log1p %48 : vector<16x1xf32>
      %cst_24 = arith.constant 5.000000e-01 : f32
      %53 = vector.broadcast %cst_24 : f32 to vector<16x1xf32>
      %54 = arith.mulf %52, %53 : vector<16x1xf32>
      %cst_25 = arith.constant 0.000000e+00 : f32
      %55 = vector.broadcast %cst_25 : f32 to vector<16x1xf32>
      %56 = arith.select %51, %54, %55 : vector<16x1xi1>, vector<16x1xf32>
      %cst_26 = arith.constant 0.000000e+00 : f32
      %57 = vector.broadcast %cst_26 : f32 to vector<16x1xf32>
      %58 = arith.cmpf ogt, %49, %57 : vector<16x1xf32>
      %59 = math.log1p %49 : vector<16x1xf32>
      %cst_27 = arith.constant 2.000000e-02 : f32
      %60 = vector.broadcast %cst_27 : f32 to vector<16x1xf32>
      %61 = arith.mulf %59, %60 : vector<16x1xf32>
      %cst_28 = arith.constant 0.000000e+00 : f32
      %62 = vector.broadcast %cst_28 : f32 to vector<16x1xf32>
      %63 = arith.select %58, %61, %62 : vector<16x1xi1>, vector<16x1xf32>
      %64 = arith.addf %56, %63 : vector<16x1xf32>
      %c0_29 = arith.constant 0 : index
      %c0_30 = arith.constant 0 : index
      %65 = vector.load %arg6[%c0_29, %c0_30] : memref<16x1xf32, #tpu.memory_space<vmem>>, vector<16x1xf32>
      tpu.vector_store %arg6[%c0_29, %c0_30], %64 {strides = array<i32>} : memref<16x1xf32, #tpu.memory_space<vmem>>, vector<16x1xf32>,
    } else {
    }
    return
  }
  func.func @transform_0(%arg0: i32, %arg1: i32, %arg2: i32) -> (i32, i32) {
    %c0_i32 = arith.constant 0 : i32
    %c0_i32_0 = arith.constant 0 : i32
    %c0_i32_1 = arith.constant 0 : i32
    return %c0_i32, %c0_i32_0 : i32, i32
  }
  func.func @transform_1(%arg0: i32, %arg1: i32, %arg2: i32) -> (i32, i32) {
    %c0_i32 = arith.constant 0 : i32
    %c0_i32_0 = arith.constant 0 : i32
    return %arg0, %c0_i32 : i32, i32
  }
  func.func @transform_2(%arg0: i32, %arg1: i32, %arg2: i32) -> (i32, i32) {
    %c0_i32 = arith.constant 0 : i32
    %c0_i32_0 = arith.constant 0 : i32
    return %c0_i32, %arg2 : i32, i32
  }
  func.func @transform_3(%arg0: i32, %arg1: i32, %arg2: i32) -> (i32, i32) {
    %c0_i32 = arith.constant 0 : i32
    %c0_i32_0 = arith.constant 0 : i32
    return %arg0, %c0_i32 : i32, i32
  }
}

</mosaic_0001>

<llo_original>
// kernel: tpu_custom_call.1
$region0: #{tpu_custom_call.1}
  #allocation0 [shape = 'u32[]', space=smem, size = 0x4, offset = 0x4, fixed_abs, tag = 'smem constant byte address 0x4 - core index']
  #allocation1 [shape = 'u32[144,128]{1,0:T(1,128)}', space=vmem, size = 0x12000, scoped, tag = 'internal scratch']
  #allocation2 [shape = 'f32[16,32]{1,0:T(8,128)}', space=vmem, size = 0x2000, scoped, tag = 'scratch operand']
  #allocation3 [shape = 'f32[16,1]{1,0:T(8,128)}', space=vmem, size = 0x2000, scoped, tag = 'scratch operand']
  #allocation4 [shape = 'f32[16,1]{1,0:T(8,128)}', space=vmem, size = 0x2000, scoped, tag = 'scratch operand']
  #allocation5 [shape = 'f32[16,1]{1,0:T(8,128)}', space=vmem, size = 0x2000, scoped, tag = 'scratch operand']
  #allocation6 [shape = 'f32[16,1]{1,0:T(8,128)}', space=vmem, size = 0x2000, scoped, tag = 'scratch operand']
  %s0 = inlined_call_operand.vmem [shape: f32[16,32], index: 0, kind: input, shape index: {}]
  %s1 = inlined_call_operand.vmem [shape: s32[16,1], index: 1, kind: input, shape index: {}]
  %s2 = inlined_call_operand.vmem [shape: s32[1,16], index: 2, kind: input, shape index: {}]
  %s3 = inlined_call_operand.vmem [shape: f32[16,1], index: 3, kind: output, shape index: {}]
  %s4 = sld [smem:[#allocation0]]
  $region61: #{tpu_custom_call.1} parent=0
    _
  %s6 = ssub.s32 1, %s4
  %s7 = scalar_select 0, %s6, %s4
  loop: start=0, step=1, limit=4
  $region2: #{tpu_custom_call.1} parent=0 // loop_pre_header
    _
  $region3: #{tpu_custom_call.1} parent=0 // loop_header
    %s9 = sphi 0, %s13
    %p10 = scmp.ge.s32.totalorder %s9, 4
    %s16 = sphi 0, %s35
    %s17 = sphi 0, %s31
    %s18 = sphi 0, %s27
    %s19 = sphi 0, %s16
    %s20 = sphi 0, %s17
    %s21 = sphi 0, %s18
    %s22 = sphi 0, %s19
    %s23 = sphi 0, %s20
    %s24 = sphi 0, %s21
    %s36 = sphi 0, %s36
    %s38 = sphi 0, %s36
    %s39 = sphi 0, %s38
    %s53 = sphi 0, %s39
    %s59 = sphi 0, %s61
    %s62 = sphi 0, %s59
    %s63 = sphi 0, %s62
    %s79 = sphi 0, %s63
    %s85 = sphi 0, %s87
    %s88 = sphi 0, %s85
    %s89 = sphi 0, %s88
    %s105 = sphi 0, %s89
    %s111 = sphi 0, %s113
    %s114 = sphi 0, %s111
    %s115 = sphi 0, %s114
    %s131 = sphi 0, %s115
  $region4: #{tpu_custom_call.1} parent=0 // loop_header_branch
    %12 = sbr.rel (%p10) target = $region8
  $region5: #{tpu_custom_call.1} parent=0 // loop_body
    %s14 = ssub.s32 %s9, 1
    %s15 = ssub.s32 %s9, 2
    %s25 = sadd.s32 1, %s18
    %p26 = scmp.ge.s32.totalorder %s25, 1
    %s27 = scalar_select %p26, 0, %s25
    %s28 = sadd.s32 1, %s17
    %s29 = scalar_select %p26, %s28, %s17
    %p30 = scmp.ge.s32.totalorder %s29, 2
    %s31 = scalar_select %p30, 0, %s29
    %s32 = sadd.s32 1, %s16
    %s33 = scalar_select %p30, %s32, %s16
    %p34 = scmp.ge.s32.totalorder %s33, 1
    %s35 = scalar_select %p34, 0, %s33
    %s37 = sadd.s32 %s36, 1
    %p40 = scmp.eq.s32.totalorder %s9, 1
    %p41 = scmp.ne.s32.totalorder %s36, %s38
    %p42 = scmp.eq.s32.totalorder %s9, 0
    %p43 = por %p41, %p42
    %p44 = scmp.ne.s32.totalorder %s36, %s38
    %p45 = scmp.eq.s32.totalorder %s14, 1
    %p46 = por %p44, %p45
    %p47 = scmp.ne.s32.totalorder %s38, %s39
    %p48 = scmp.eq.s32.totalorder %s14, 0
    %p49 = por %p47, %p48
    %p50 = scmp.ne.s32.totalorder %s38, %s39
    %p51 = scmp.eq.s32.totalorder %s15, 1
    %p52 = por %p50, %p51
    %p54 = scmp.ne.s32.totalorder %s39, %s53
    %p55 = scmp.eq.s32.totalorder %s15, 0
    %p56 = por %p54, %p55
    %s57 = ssub.s32 %s16, %s35
    %p58 = scmp.eq.s32.totalorder %s57, 0
    %s60 = sadd.s32 %s59, 1
    %s61 = scalar_select %p58, %s59, %s60
    %p64 = pneg %p58
    %p65 = scmp.eq.s32.totalorder %s9, 1
    %p66 = por %p64, %p65
    %p67 = scmp.ne.s32.totalorder %s59, %s62
    %p68 = scmp.eq.s32.totalorder %s9, 0
    %p69 = por %p67, %p68
    %p70 = scmp.ne.s32.totalorder %s59, %s62
    %p71 = scmp.eq.s32.totalorder %s14, 1
    %p72 = por %p70, %p71
    %p73 = scmp.ne.s32.totalorder %s62, %s63
    %p74 = scmp.eq.s32.totalorder %s14, 0
    %p75 = por %p73, %p74
    %p76 = scmp.ne.s32.totalorder %s62, %s63
    %p77 = scmp.eq.s32.totalorder %s15, 1
    %p78 = por %p76, %p77
    %p80 = scmp.ne.s32.totalorder %s63, %s79
    %p81 = scmp.eq.s32.totalorder %s15, 0
    %p82 = por %p80, %p81
    %s83 = ssub.s32 %s18, %s27
    %p84 = scmp.eq.s32.totalorder %s83, 0
    %s86 = sadd.s32 %s85, 1
    %s87 = scalar_select %p84, %s85, %s86
    %p90 = pneg %p84
    %p91 = scmp.eq.s32.totalorder %s9, 1
    %p92 = por %p90, %p91
    %p93 = scmp.ne.s32.totalorder %s85, %s88
    %p94 = scmp.eq.s32.totalorder %s9, 0
    %p95 = por %p93, %p94
    %p96 = scmp.ne.s32.totalorder %s85, %s88
    %p97 = scmp.eq.s32.totalorder %s14, 1
    %p98 = por %p96, %p97
    %p99 = scmp.ne.s32.totalorder %s88, %s89
    %p100 = scmp.eq.s32.totalorder %s14, 0
    %p101 = por %p99, %p100
    %p102 = scmp.ne.s32.totalorder %s88, %s89
    %p103 = scmp.eq.s32.totalorder %s15, 1
    %p104 = por %p102, %p103
    %p106 = scmp.ne.s32.totalorder %s89, %s105
    %p107 = scmp.eq.s32.totalorder %s15, 0
    %p108 = por %p106, %p107
    %s109 = ssub.s32 %s16, %s35
    %p110 = scmp.eq.s32.totalorder %s109, 0
    %s112 = sadd.s32 %s111, 1
    %s113 = scalar_select %p110, %s111, %s112
    %p116 = pneg %p110
    %p117 = scmp.eq.s32.totalorder %s9, 1
    %p118 = por %p116, %p117
    %p119 = scmp.ne.s32.totalorder %s111, %s114
    %p120 = scmp.eq.s32.totalorder %s9, 0
    %p121 = por %p119, %p120
    %p122 = scmp.ne.s32.totalorder %s111, %s114
    %p123 = scmp.eq.s32.totalorder %s14, 1
    %p124 = por %p122, %p123
    %p125 = scmp.ne.s32.totalorder %s114, %s115
    %p126 = scmp.eq.s32.totalorder %s14, 0
    %p127 = por %p125, %p126
    %p128 = scmp.ne.s32.totalorder %s114, %s115
    %p129 = scmp.eq.s32.totalorder %s15, 1
    %p130 = por %p128, %p129
    %p132 = scmp.ne.s32.totalorder %s115, %s131
    %p133 = scmp.eq.s32.totalorder %s15, 0
    %p134 = por %p132, %p133
    %p135 = scmp.le.s32.totalorder 1, %s9
    %p136 = scmp.lt.s32.totalorder %s9, 3
    %p137 = pnand %p135, %p136
    %p138 = pneg %p137
    // Predicated region
    $region9: #{tpu_custom_call.1} parent=5 // pred_check
      _
    $region10: #{tpu_custom_call.1} parent=5 // pred_check_branch
      %140 = sbr.rel (%p137) target = $region12
    $region11: #{tpu_custom_call.1} parent=5 // pred_region
      %s141 = ssub.s32 %s9, 1
      // Predicated region
      $region13: #{tpu_custom_call.1} parent=11 // pred_check
        %p142 = pneg %p49
      $region14: #{tpu_custom_call.1} parent=11 // pred_check_branch
        %144 = sbr.rel (%p142) target = $region16
      $region15: #{tpu_custom_call.1} parent=11 // pred_region
        _
      $region16: #{tpu_custom_call.1} parent=11 // pred_fallthru
        _
      // Predicated region
      $region17: #{tpu_custom_call.1} parent=11 // pred_check
        %p145 = pneg %p75
      $region18: #{tpu_custom_call.1} parent=11 // pred_check_branch
        %147 = sbr.rel (%p145) target = $region20
      $region19: #{tpu_custom_call.1} parent=11 // pred_region
        %s148 = smul.u32 2, %s19
        %p149 = scmp.lt.s32.totalorder %s148, 1
        %s150 = scalar_select %p149, %s148, 1
        %s151 = smul.addr %s150, 8
        %s152 = scalar_lea.vmem %s1, %s151
        %s153 = smul.u32 2, %s19
      $region20: #{tpu_custom_call.1} parent=11 // pred_fallthru
        _
      // Predicated region
      $region21: #{tpu_custom_call.1} parent=11 // pred_check
        %p154 = pneg %p101
      $region22: #{tpu_custom_call.1} parent=11 // pred_check_branch
        %156 = sbr.rel (%p154) target = $region24
      $region23: #{tpu_custom_call.1} parent=11 // pred_region
        %p157 = scmp.lt.s32.totalorder %s21, 0
        %s158 = scalar_select %p157, %s21, 0
        %s159 = scalar_lea.vmem %s2, %s158
      $region24: #{tpu_custom_call.1} parent=11 // pred_fallthru
        _
    $region12: #{tpu_custom_call.1} parent=5 // pred_fallthru
      _
    %p160 = scmp.lt.s32.totalorder %s9, 2
    // Predicated region
    $region25: #{tpu_custom_call.1} parent=5 // pred_check
      %p161 = pneg %p160
    $region26: #{tpu_custom_call.1} parent=5 // pred_check_branch
      %163 = sbr.rel (%p161) target = $region28
    $region27: #{tpu_custom_call.1} parent=5 // pred_region
      _
    $region28: #{tpu_custom_call.1} parent=5 // pred_fallthru
      _
    %p164 = scmp.le.s32.totalorder 1, %s9
    %p165 = scmp.lt.s32.totalorder %s9, 3
    %p166 = pnand %p164, %p165
    %p167 = pneg %p166
    // Predicated region
    $region29: #{tpu_custom_call.1} parent=5 // pred_check
      _
    $region30: #{tpu_custom_call.1} parent=5 // pred_check_branch
      %169 = sbr.rel (%p166) target = $region32
    $region31: #{tpu_custom_call.1} parent=5 // pred_region
      %s170 = ssub.s32 %s9, 1
      %p171 = pneg %p49
      %p172 = pneg %p46
      %s173 = smul.u32 2, %s19
      %p174 = scmp.lt.s32.totalorder %s173, 1
      %s175 = scalar_select %p174, %s173, 1
      %s176 = smul.addr %s175, 8
      %s177 = scalar_lea.vmem %s1, %s176
      %p178 = pneg %p75
      %p179 = pneg %p72
      %p180 = scmp.lt.s32.totalorder %s21, 0
      %s181 = scalar_select %p180, %s21, 0
      %s182 = scalar_lea.vmem %s2, %s181
      %p183 = pneg %p101
      %p184 = pneg %p98
      %p185 = pneg %p127
      %p186 = pneg %p124
      %s187 = smul.u32 2, %s19
      %p188 = scmp.lt.s32.totalorder %s187, 1
      %s189 = scalar_select %p188, %s187, 1
      %s190 = smul.addr %s189, 8
      %s191 = scalar_lea.vmem %s3, %s190
      %s192 = smul.u32 2, %s19
      %p193 = scmp.lt.s32.totalorder %s192, 1
      %s194 = scalar_select %p193, %s192, 1
      %s195 = smul.addr %s194, 8
      %s196 = scalar_lea.vmem %s1, %s195
      %s197 = smul.u32 2, %s19
      %p198 = scmp.lt.s32.totalorder %s21, 0
      %s199 = scalar_select %p198, %s21, 0
      %s200 = scalar_lea.vmem %s2, %s199
      %s201 = smul.u32 2, %s19
      %p202 = scmp.lt.s32.totalorder %s201, 1
      %s203 = scalar_select %p202, %s201, 1
      %s204 = smul.addr %s203, 8
      %s205 = scalar_lea.vmem %s3, %s204
      %s206 = smul.u32 2, %s19
      %p207 = scmp.eq.s32.totalorder %s20, 0
      %p208 = scmp.eq.s32.totalorder %s21, 0
      %p209 = pnand %p207, %p208
      %p210 = pneg %p209
      // Predicated region
      $region33: #{tpu_custom_call.1} parent=31 // pred_check
        _
      $region34: #{tpu_custom_call.1} parent=31 // pred_check_branch
        %212 = sbr.rel (%p209) target = $region36
      $region35: #{tpu_custom_call.1} parent=31 // pred_region
        %s213 = smul.u32 %s19, 16
        %s214 = scalar_lea.vmem %s0, %s213
        %v215 = vld [vmem:[%s214] sm:$0xff]
        %v216 = vld [vmem:[%s214 + $0x8] sm:$0xff]
        %v217 = vmul.f32 %v215, %v215
        %v218 = vmul.f32 %v216, %v216
        %vm219 = vcmask 261120
        %v220 = vsel %vm219, %v217, 0.0
        %221 = vadd.xlane.f32.xlu0 %v220
        %v222 = vpop.xlane.xlu0 %221
        %v223 = vsel %vm219, %v218, 0.0
        %224 = vadd.xlane.f32.xlu0 %v223
        %v225 = vpop.xlane.xlu0 %224
        %v226 = vmax.f32 %v222, 1e-24
        %v227 = vmax.f32 %v225, 1e-24
        %v228 = vrsqrt.pop %v226
        %v229 = vrsqrt.pop %v227
        %v230 = vmul.f32 %v215, %v228
        %v231 = vmul.f32 %v216, %v229
        %232 = vst.msk [vmem:[#allocation2] sm:$0xff] %vm219, %v230
        %233 = vst.msk [vmem:[#allocation2 + $0x8] sm:$0xff] %vm219, %v231
        %vm234 = vcmask 7168
        %235 = vst.msk [vmem:[#allocation3] sm:$0xff] %vm234, -inf
        %236 = vst.msk [vmem:[#allocation3 + $0x8] sm:$0xff] %vm234, -inf
        %237 = vst.msk [vmem:[#allocation4] sm:$0xff] %vm234, inf
        %238 = vst.msk [vmem:[#allocation4 + $0x8] sm:$0xff] %vm234, inf
        %239 = vst.msk [vmem:[#allocation5] sm:$0xff] %vm234, 0.0
        %240 = vst.msk [vmem:[#allocation5 + $0x8] sm:$0xff] %vm234, 0.0
        %241 = vst.msk [vmem:[#allocation6] sm:$0xff] %vm234, 0.0
        %242 = vst.msk [vmem:[#allocation6 + $0x8] sm:$0xff] %vm234, 0.0
      $region36: #{tpu_custom_call.1} parent=31 // pred_fallthru
        _
      %s243 = smul.u32 %s21, 16
      %s244 = scalar_lea.vmem %s0, %s243
      %v245 = vld [vmem:[%s244] sm:$0xff]
      %v246 = vld [vmem:[%s244 + $0x8] sm:$0xff]
      %v247 = vmul.f32 %v245, %v245
      %v248 = vmul.f32 %v246, %v246
      %vm249 = vcmask 261120
      %v250 = vsel %vm249, %v247, 0.0
      %251 = vadd.xlane.f32.xlu0 %v250
      %v252 = vpop.xlane.xlu0 %251
      %v253 = vsel %vm249, %v248, 0.0
      %254 = vadd.xlane.f32.xlu0 %v253
      %v255 = vpop.xlane.xlu0 %254
      %v256 = vmax.f32 %v252, 1e-24
      %v257 = vmax.f32 %v255, 1e-24
      %v258 = vrsqrt.pop %v256
      %v259 = vrsqrt.pop %v257
      %v260 = vmul.f32 %v245, %v258
      %v261 = vmul.f32 %v246, %v259
      %v262 = vld [vmem:[#allocation2] sm:$0xff]
      %v263 = vld [vmem:[#allocation2 + $0x8] sm:$0xff]
      %v265 = vsel %vm249, %v262, 0
      %v268 = vsel %vm249, %v263, 0
      %v271 = vsel %vm249, %v260, 0
      %v274 = vsel %vm249, %v261, 0
      %276 = vmatprep.subr.mxu0 0.0
      %277 = vmatpush1.xpose.msra.mxu0 0.0
      %278 = vmatprep.subr.mxu0 0.0
      %279 = vmatpush1.xpose.msra.mxu0 0.0
      %280 = vmatprep.subr.mxu0 0.0
      %281 = vmatpush1.xpose.msra.mxu0 0.0
      %282 = vmatprep.subr.mxu0 0.0
      %283 = vmatpush1.xpose.msra.mxu0 0.0
      %284 = vmatprep.subr.mxu0 0.0
      %285 = vmatpush1.xpose.msra.mxu0 0.0
      %286 = vmatprep.subr.mxu0 0.0
      %287 = vmatpush1.xpose.msra.mxu0 0.0
      %288 = vmatprep.subr.mxu0 0.0
      %289 = vmatpush1.xpose.msra.mxu0 0.0
      %290 = vmatprep.subr.mxu0 0.0
      %291 = vmatpush1.xpose.msra.mxu0 0.0
      %292 = vmatprep.subr.mxu0 0.0
      %293 = vmatpush1.xpose.msra.mxu0 0.0
      %294 = vmatprep.subr.mxu0 0.0
      %295 = vmatpush1.xpose.msra.mxu0 0.0
      %296 = vmatprep.subr.mxu0 0.0
      %297 = vmatpush1.xpose.msra.mxu0 0.0
      %298 = vmatprep.subr.mxu0 0.0
      %299 = vmatpush1.xpose.msra.mxu0 0.0
      %300 = vmatprep.subr.mxu0 0.0
      %301 = vmatpush1.xpose.msra.mxu0 0.0
      %302 = vmatprep.subr.mxu0 0.0
      %303 = vmatpush1.xpose.msra.mxu0 0.0
      %304 = vmatprep.subr.mxu0 0.0
      %305 = vmatpush1.xpose.msra.mxu0 %v274
      %306 = vmatprep.subr.mxu0 0.0
      %307 = vmatpush1.xpose.msra.mxu0 %v271
      %308 = vmatprep.subr.mxu0 0.0
      %309 = vmatpush2.xpose.msra.mxu0 0.0
      %310 = vmatprep.subr.mxu0 0.0
      %311 = vmatpush2.xpose.msra.mxu0 0.0
      %312 = vmatprep.subr.mxu0 0.0
      %313 = vmatpush2.xpose.msra.mxu0 0.0
      %314 = vmatprep.subr.mxu0 0.0
      %315 = vmatpush2.xpose.msra.mxu0 0.0
      %316 = vmatprep.subr.mxu0 0.0
      %317 = vmatpush2.xpose.msra.mxu0 0.0
      %318 = vmatprep.subr.mxu0 0.0
      %319 = vmatpush2.xpose.msra.mxu0 0.0
      %320 = vmatprep.subr.mxu0 0.0
      %321 = vmatpush2.xpose.msra.mxu0 0.0
      %322 = vmatprep.subr.mxu0 0.0
      %323 = vmatpush2.xpose.msra.mxu0 0.0
      %324 = vmatprep.subr.mxu0 0.0
      %325 = vmatpush2.xpose.msra.mxu0 0.0
      %326 = vmatprep.subr.mxu0 0.0
      %327 = vmatpush2.xpose.msra.mxu0 0.0
      %328 = vmatprep.subr.mxu0 0.0
      %329 = vmatpush2.xpose.msra.mxu0 0.0
      %330 = vmatprep.subr.mxu0 0.0
      %331 = vmatpush2.xpose.msra.mxu0 0.0
      %332 = vmatprep.subr.mxu0 0.0
      %333 = vmatpush2.xpose.msra.mxu0 0.0
      %334 = vmatprep.subr.mxu0 0.0
      %335 = vmatpush2.xpose.msra.mxu0 0.0
      %336 = vmatprep.subr.mxu0 0.0
      %337 = vmatpush2.xpose.msra.mxu0 0.0
      %338 = vmatprep.subr.mxu0 0.0
      %339 = vmatpush2.xpose.msra.mxu0 0.0
      %340 = vmatprep.mubr.f32.mxu0 0.0
      %341 = vmatmul.mubr.f32.gmra.mxu0 %v265
      %v342 = vpop.f32.mrf.mxu0
      %v343 = vadd.f32 0.0, %v342
      %v344 = vpop.f32.mrf.mxu0
      %345 = vmatprep.mubr.f32.mxu0 0.0
      %346 = vmatmul.mubr.f32.gmra.mxu0 %v268
      %v347 = vpop.f32.mrf.mxu0
      %v348 = vadd.f32 0.0, %v347
      %v349 = vpop.f32.mrf.mxu0
      %350 = vdwg.mxu0
      %v351 = vld [vmem:[%s196] sm:$0xff]
      %v352 = vld [vmem:[%s196 + $0x8] sm:$0xff]
      %v353 = vld [vmem:[%s200] sm:$0x1]
      %354 = vset.pattern.permute.xlu0 0
      %355 = vperm.xlu0 %354, %v351
      %v356 = vpop.permute.xlu0 %355
      %357 = vset.pattern.permute.xlu0 0
      %358 = vperm.xlu0 %357, %v352
      %v359 = vpop.permute.xlu0 %358
      %v360 = vlaneseq
      %v361 = vshrl.u32 %v360, 7
      %v362 = vsub.s32 0, %v361
      %v363 = vrot.slane %v353, %v362
      %vm364 = vcmp.eq.s32.totalorder %v356, %v363
      %vm365 = vcmp.eq.s32.totalorder %v359, %v363
      %s366 = smul.u32 %s19, 16
      %v367 = vlaneseq
      %v368 = vshrl.u32 %v367, 7
      %v369 = vadd.s32 %v368, 8
      %v370 = vstv %s366
      %v371 = vadd.s32 %v370, %v368
      %v372 = vadd.s32 %v370, %v369
      %v373 = vlaneseq
      %v374 = vand.u32 %v373, 127
      %v375 = vstv %s243
      %v376 = vadd.s32 %v375, %v374
      %vm377 = vcmp.ne.s32.totalorder %v371, %v376
      %vm378 = vcmp.ne.s32.totalorder %v372, %v376
      %vm379 = vmand %vm364, %vm377
      %vm380 = vmand %vm365, %vm378
      %vm381 = vmxor %vm364, 1
      %vm382 = vmxor %vm365, 1
      // Predicated region
      $region37: #{tpu_custom_call.1} parent=31 // pred_check
        %p383 = pneg %p207
      $region38: #{tpu_custom_call.1} parent=31 // pred_check_branch
        %385 = sbr.rel (%p383) target = $region40
      $region39: #{tpu_custom_call.1} parent=31 // pred_region
        %v386 = vld [vmem:[#allocation3] sm:$0xff]
        %v387 = vld [vmem:[#allocation3 + $0x8] sm:$0xff]
        %v388 = vsel %vm381, %v343, -inf
        %v389 = vsel %vm382, %v348, -inf
        %vm390 = vcmask 130048
        %v391 = vsel %vm390, %v388, -inf
        %392 = vmax.xlane.f32.xlu0 %v391
        %v393 = vpop.xlane.xlu0 %392
        %v394 = vsel %vm390, %v389, -inf
        %395 = vmax.xlane.f32.xlu0 %v394
        %v396 = vpop.xlane.xlu0 %395
        %v397 = vmax.f32 %v386, %v393
        %v398 = vmax.f32 %v387, %v396
        %vm399 = vcmask 7168
        %400 = vst.msk [vmem:[#allocation3] sm:$0xff] %vm399, %v397
        %401 = vst.msk [vmem:[#allocation3 + $0x8] sm:$0xff] %vm399, %v398
        %v402 = vld [vmem:[#allocation4] sm:$0xff]
        %v403 = vld [vmem:[#allocation4 + $0x8] sm:$0xff]
        %v404 = vsel %vm379, %v343, inf
        %v405 = vsel %vm380, %v348, inf
        %v406 = vsel %vm390, %v404, inf
        %407 = vmin.xlane.f32.xlu0 %v406
        %v408 = vpop.xlane.xlu0 %407
        %v409 = vsel %vm390, %v405, inf
        %410 = vmin.xlane.f32.xlu0 %v409
        %v411 = vpop.xlane.xlu0 %410
        %v412 = vmin.f32 %v402, %v408
        %v413 = vmin.f32 %v403, %v411
        %414 = vst.msk [vmem:[#allocation4] sm:$0xff] %vm399, %v412
        %415 = vst.msk [vmem:[#allocation4 + $0x8] sm:$0xff] %vm399, %v413
      $region40: #{tpu_custom_call.1} parent=31 // pred_fallthru
        _
      %p416 = scmp.eq.s32.totalorder %s20, 1
      // Predicated region
      $region41: #{tpu_custom_call.1} parent=31 // pred_check
        %p417 = pneg %p416
      $region42: #{tpu_custom_call.1} parent=31 // pred_check_branch
        %419 = sbr.rel (%p417) target = $region44
      $region43: #{tpu_custom_call.1} parent=31 // pred_region
        %v420 = vsub.f32 %v343, 0.1
        %v421 = vsub.f32 %v348, 0.1
        %v422 = vld [vmem:[#allocation3] sm:$0xff]
        %v423 = vld [vmem:[#allocation3 + $0x8] sm:$0xff]
        %425 = vset.pattern.permute.xlu0 0
        %426 = vperm.xlu0 %425, %v422
        %v427 = vpop.permute.xlu0 %426
        %430 = vset.pattern.permute.xlu0 0
        %431 = vperm.xlu0 %430, %v423
        %v432 = vpop.permute.xlu0 %431
        %vm434 = vcmp.lt.f32.partialorder %v420, %v427
        %vm435 = vcmp.lt.f32.partialorder %v421, %v432
        %vm436 = vmand %vm379, %vm434
        %vm437 = vmand %vm380, %vm435
        %v438 = vadd.f32 %v343, 0.1
        %v439 = vadd.f32 %v348, 0.1
        %v440 = vld [vmem:[#allocation4] sm:$0xff]
        %v441 = vld [vmem:[#allocation4 + $0x8] sm:$0xff]
        %443 = vset.pattern.permute.xlu0 0
        %444 = vperm.xlu0 %443, %v440
        %v445 = vpop.permute.xlu0 %444
        %448 = vset.pattern.permute.xlu0 0
        %449 = vperm.xlu0 %448, %v441
        %v450 = vpop.permute.xlu0 %449
        %vm452 = vcmp.gt.f32.partialorder %v438, %v445
        %vm453 = vcmp.gt.f32.partialorder %v439, %v450
        %vm454 = vmand %vm381, %vm452
        %vm455 = vmand %vm382, %vm453
        %v456 = vld [vmem:[#allocation5] sm:$0xff]
        %v457 = vld [vmem:[#allocation5 + $0x8] sm:$0xff]
        %v458 = vsub.f32 0.5, %v343
        %v459 = vsub.f32 0.5, %v348
        %v460 = vmul.f32 %v458, 2.0
        %v461 = vmul.f32 %v459, 2.0
        %v462 = vmul.f32 %v460, 1.442695
        %v463 = vpow.pop %v462
        %v464 = vmul.f32 %v461, 1.442695
        %v465 = vpow.pop %v464
        %v466 = vsel %vm436, %v463, 0.0
        %v467 = vsel %vm437, %v465, 0.0
        %vm468 = vcmask 130048
        %v469 = vsel %vm468, %v466, 0.0
        %470 = vadd.xlane.f32.xlu0 %v469
        %v471 = vpop.xlane.xlu0 %470
        %v472 = vsel %vm468, %v467, 0.0
        %473 = vadd.xlane.f32.xlu0 %v472
        %v474 = vpop.xlane.xlu0 %473
        %v475 = vadd.f32 %v456, %v471
        %v476 = vadd.f32 %v457, %v474
        %vm477 = vcmask 7168
        %478 = vst.msk [vmem:[#allocation5] sm:$0xff] %vm477, %v475
        %479 = vst.msk [vmem:[#allocation5 + $0x8] sm:$0xff] %vm477, %v476
        %v480 = vld [vmem:[#allocation6] sm:$0xff]
        %v481 = vld [vmem:[#allocation6 + $0x8] sm:$0xff]
        %v482 = vsub.f32 %v343, 0.5
        %v483 = vsub.f32 %v348, 0.5
        %v484 = vmul.f32 %v482, 50.0
        %v485 = vmul.f32 %v483, 50.0
        %v486 = vmul.f32 %v484, 1.442695
        %v487 = vpow.pop %v486
        %v488 = vmul.f32 %v485, 1.442695
        %v489 = vpow.pop %v488
        %v490 = vsel %vm454, %v487, 0.0
        %v491 = vsel %vm455, %v489, 0.0
        %v492 = vsel %vm468, %v490, 0.0
        %493 = vadd.xlane.f32.xlu0 %v492
        %v494 = vpop.xlane.xlu0 %493
        %v495 = vsel %vm468, %v491, 0.0
        %496 = vadd.xlane.f32.xlu0 %v495
        %v497 = vpop.xlane.xlu0 %496
        %v498 = vadd.f32 %v480, %v494
        %v499 = vadd.f32 %v481, %v497
        %500 = vst.msk [vmem:[#allocation6] sm:$0xff] %vm477, %v498
        %501 = vst.msk [vmem:[#allocation6 + $0x8] sm:$0xff] %vm477, %v499
      $region44: #{tpu_custom_call.1} parent=31 // pred_fallthru
        _
      %p502 = pnand %p416, %p208
      %p503 = pneg %p502
      // Predicated region
      $region45: #{tpu_custom_call.1} parent=31 // pred_check
        _
      $region46: #{tpu_custom_call.1} parent=31 // pred_check_branch
        %505 = sbr.rel (%p502) target = $region48
      $region47: #{tpu_custom_call.1} parent=31 // pred_region
        %v506 = vld [vmem:[#allocation5] sm:$0xff]
        %v507 = vld [vmem:[#allocation5 + $0x8] sm:$0xff]
        %v508 = vld [vmem:[#allocation6] sm:$0xff]
        %v509 = vld [vmem:[#allocation6 + $0x8] sm:$0xff]
        %vm510 = vcmp.gt.f32.partialorder %v506, 0.0
        %vm511 = vcmp.gt.f32.partialorder %v507, 0.0
        %v512 = vadd.f32 %v506, 1.0
        %v513 = vlog2.pop %v512
        %v514 = vmul.f32 %v513, 0.6931472
        %v515 = vmul.f32 -0.5, %v506
        %v516 = vadd.f32 %v515, 1.0
        %v517 = vmul.f32 %v516, %v506
        %v518 = vand.u32 2147483647, %v506
        %vm519 = vcmp.lt.f32.partialorder %v518, 0.0004427343
        %v520 = vsel %vm519, %v517, %v514
        %v521 = vadd.f32 %v507, 1.0
        %v522 = vlog2.pop %v521
        %v523 = vmul.f32 %v522, 0.6931472
        %v524 = vmul.f32 -0.5, %v507
        %v525 = vadd.f32 %v524, 1.0
        %v526 = vmul.f32 %v525, %v507
        %v527 = vand.u32 2147483647, %v507
        %vm528 = vcmp.lt.f32.partialorder %v527, 0.0004427343
        %v529 = vsel %vm528, %v526, %v523
        %v530 = vmul.f32 %v520, 0.5
        %v531 = vmul.f32 %v529, 0.5
        %v532 = vsel %vm510, %v530, 0.0
        %v533 = vsel %vm511, %v531, 0.0
        %vm534 = vcmp.gt.f32.partialorder %v508, 0.0
        %vm535 = vcmp.gt.f32.partialorder %v509, 0.0
        %v536 = vadd.f32 %v508, 1.0
        %v537 = vlog2.pop %v536
        %v538 = vmul.f32 %v537, 0.6931472
        %v539 = vmul.f32 -0.5, %v508
        %v540 = vadd.f32 %v539, 1.0
        %v541 = vmul.f32 %v540, %v508
        %v542 = vand.u32 2147483647, %v508
        %vm543 = vcmp.lt.f32.partialorder %v542, 0.0004427343
        %v544 = vsel %vm543, %v541, %v538
        %v545 = vadd.f32 %v509, 1.0
        %v546 = vlog2.pop %v545
        %v547 = vmul.f32 %v546, 0.6931472
        %v548 = vmul.f32 -0.5, %v509
        %v549 = vadd.f32 %v548, 1.0
        %v550 = vmul.f32 %v549, %v509
        %v551 = vand.u32 2147483647, %v509
        %vm552 = vcmp.lt.f32.partialorder %v551, 0.0004427343
        %v553 = vsel %vm552, %v550, %v547
        %v554 = vmul.f32 %v544, 0.02
        %v555 = vmul.f32 %v553, 0.02
        %v556 = vsel %vm534, %v554, 0.0
        %v557 = vsel %vm535, %v555, 0.0
        %v558 = vadd.f32 %v532, %v556
        %v559 = vadd.f32 %v533, %v557
        %vm560 = vcmask 7168
        %561 = vst.msk [vmem:[%s205] sm:$0xff] %vm560, %v558
        %562 = vst.msk [vmem:[%s205 + $0x8] sm:$0xff] %vm560, %v559
      $region48: #{tpu_custom_call.1} parent=31 // pred_fallthru
        _
      %s563 = smul.u32 2, %s19
      %p564 = scmp.lt.s32.totalorder %s563, 1
      %s565 = scalar_select %p564, %s563, 1
      %s566 = smul.addr %s565, 8
      %s567 = scalar_lea.vmem %s3, %s566
      // Predicated region
      $region49: #{tpu_custom_call.1} parent=31 // pred_check
        %p568 = pneg %p124
      $region50: #{tpu_custom_call.1} parent=31 // pred_check_branch
        %570 = sbr.rel (%p568) target = $region52
      $region51: #{tpu_custom_call.1} parent=31 // pred_region
        %s571 = smul.u32 2, %s19
      $region52: #{tpu_custom_call.1} parent=31 // pred_fallthru
        _
      // Predicated region
      $region53: #{tpu_custom_call.1} parent=31 // pred_check
        %p572 = pneg %p124
      $region54: #{tpu_custom_call.1} parent=31 // pred_check_branch
        %574 = sbr.rel (%p572) target = $region56
      $region55: #{tpu_custom_call.1} parent=31 // pred_region
        %s575 = smul.u32 2, %s19
        %p576 = scmp.lt.s32.totalorder %s575, 1
        %s577 = scalar_select %p576, %s575, 1
        %s578 = smul.addr %s577, 8
        %s579 = scalar_lea.vmem %s3, %s578
      $region56: #{tpu_custom_call.1} parent=31 // pred_fallthru
        _
    $region32: #{tpu_custom_call.1} parent=5 // pred_fallthru
      _
    %p580 = scmp.le.s32.totalorder 2, %s9
    // Predicated region
    $region57: #{tpu_custom_call.1} parent=5 // pred_check
      %p581 = pneg %p580
    $region58: #{tpu_custom_call.1} parent=5 // pred_check_branch
      %583 = sbr.rel (%p581) target = $region60
    $region59: #{tpu_custom_call.1} parent=5 // pred_region
      %s584 = ssub.s32 %s9, 2
    $region60: #{tpu_custom_call.1} parent=5 // pred_fallthru
      _
  $region6: #{tpu_custom_call.1} parent=0 // loop_footer
    %s13 = sadd.s32 1, %s9
  $region7: #{tpu_custom_call.1} parent=0 // loop_footer_branch
    %8 = sbr.rel target = $region3
  $region8: #{tpu_custom_call.1} parent=0 // loop_exit
    _

</llo_original>
